<compile_context>
chip_gen: v7x
topology: tpu7x:2x2x1
jax: 0.10.0
libtpu: 0.0.40
codegen_flags: <defaults>
</compile_context>

<pallas_src>
import jax
import jax.numpy as jnp
from jax import lax
from jax.experimental import pallas as pl
from jax.experimental.pallas import tpu as pltpu


def _round_up(x, m):
    return (x + m - 1) // m * m


def _sublane_pack(dtype):
    return {4: 8, 2: 16, 1: 32}.get(jnp.dtype(dtype).itemsize, 8)


def _make_loss_kernel(loss_type, normalize_target, n_rows, n_feat, batch,
                      total_elems):
    """n_rows / n_feat / total_elems are the TRUE (unpadded) sizes."""

    def kernel(inp_ref, tgt_ref, out_ref, acc_ref):
        i = pl.program_id(0)

        @pl.when(i == 0)
        def _():
            acc_ref[...] = jnp.zeros_like(acc_ref)

        x = inp_ref[...].astype(jnp.float32)
        t = tgt_ref[...].astype(jnp.float32)   # target.detach(): fwd only anyway

        if normalize_target:
            mean = jnp.mean(t, axis=-1, keepdims=True)
            # torch.Tensor.var default is unbiased (ddof=1)
            var = jnp.sum((t - mean) ** 2, axis=-1, keepdims=True) * (
                1.0 / float(n_feat - 1))
            t = (t - mean) * lax.rsqrt(var + 1e-6)

        if loss_type in ("mse", "mse_sum"):
            d = x - t
            contrib = d * d
        elif loss_type == "l1":
            contrib = jnp.abs(x - t)
        elif loss_type == "cosine":
            # per-row cosine, rewritten as an elementwise contribution:
            #   cos_row = sum_d( x_d * t_d * inv_denom_row )
            eps = jnp.float32(1e-8)
            nx = jnp.sqrt(jnp.sum(x * x, axis=-1, keepdims=True))
            nt = jnp.sqrt(jnp.sum(t * t, axis=-1, keepdims=True))
            inv = 1.0 / (jnp.maximum(nx, eps) * jnp.maximum(nt, eps))
            contrib = (x * t) * inv
        elif loss_type == "cross_entropy_sum":
            # soft-target cross entropy: -sum(t * log_softmax(x))
            m = jnp.max(x, axis=-1, keepdims=True)
            lse = m + jnp.log(jnp.sum(jnp.exp(x - m), axis=-1, keepdims=True))
            contrib = -t * (x - lse)
        else:
            raise ValueError(f"Unknown loss {loss_type}")

        # Pure elementwise VPU accumulate every step (no XLU reduce, no SMEM
        # scalar round-trip in the steady state).
        acc_ref[...] += contrib

        @pl.when(i == pl.num_programs(0) - 1)
        def _():
            total = jnp.sum(acc_ref[...])          # single final reduction
            if loss_type in ("mse", "l1"):
                loss = total * (1.0 / float(total_elems))   # mean over elements
            elif loss_type in ("mse_sum", "cross_entropy_sum"):
                loss = total * (1.0 / float(batch))         # sum / batch size
            else:  # cosine
                loss = -total * (1.0 / float(n_rows))       # -mean over rows
            out_ref[0, 0] = loss

    return kernel


def reconstruction_loss(inp, tgt, *, loss_type="mse", normalize_target=False,
                        weight=1.0, global_step=0,
                        target_block_bytes=2 << 20):
    """Pallas equivalent of ReconstructionLoss.forward(input, target, global_step)."""
    assert inp.shape == tgt.shape
    batch = inp.shape[0]
    n_feat = inp.shape[-1]
    n_rows = inp.size // n_feat
    total_elems = n_rows * n_feat
    if normalize_target:
        assert n_feat > 1, "unbiased variance needs at least 2 features"

    # Elementwise variants (no per-row structure needed) -> lane-dense layout.
    elementwise = (loss_type in ("mse", "mse_sum", "l1")) and not normalize_target

    pack = max(_sublane_pack(inp.dtype), _sublane_pack(tgt.dtype))

    if elementwise:
        lane_dim = 128
        layout_rows = pl.cdiv(total_elems, lane_dim)
    else:
        lane_dim = n_feat
        layout_rows = n_rows

    # Tile sizing: ~2 MiB per f32 accumulator / padded input buffer.
    # 2 inputs x 2 pipeline buffers + acc  <  16 MiB (v5e default scoped VMEM,
    # also safely inside v6e's 32 MiB and v7x's 32 MiB scoped / 64 MiB physical).
    padded_lane = max(128, lane_dim)        # VMEM lane padding
    rows_budget = max(pack, (target_block_bytes // (padded_lane * 4)) // pack * pack)
    block_rows = min(rows_budget, _round_up(layout_rows, pack))
    padded_rows = _round_up(layout_rows, block_rows)
    grid = (padded_rows // block_rows,)

    def _prep(a):
        # Zero padding is exact for every variant:
        #   mse/l1: (0-0)^2 = 0;  cosine: 0 * 1/(eps*eps) = 0;
        #   CE: -0 * logp = 0;  normalize: t=0 -> contributes 0.
        if elementwise:
            flat = a.reshape(-1)
            pad = padded_rows * lane_dim - flat.shape[0]
            if pad:
                flat = jnp.pad(flat, (0, pad))
            return flat.reshape(padded_rows, lane_dim)
        m = a.reshape(layout_rows, n_feat)
        pad = padded_rows - layout_rows
        if pad:
            m = jnp.pad(m, ((0, pad), (0, 0)))
        return m

    xin = _prep(inp)
    tin = _prep(tgt)

    kernel = _make_loss_kernel(loss_type, normalize_target, n_rows, n_feat,
                               batch, total_elems)

    padded_elems = padded_rows * lane_dim
    if loss_type == "cross_entropy_sum":
        trans = padded_elems
    elif loss_type == "cosine" or normalize_target:
        trans = 4 * padded_rows
    else:
        trans = 0
    cost = pl.CostEstimate(
        flops=4 * padded_elems,
        transcendentals=trans,
        bytes_accessed=(xin.size * xin.dtype.itemsize
                        + tin.size * tin.dtype.itemsize + 4))

    out = pl.pallas_call(
        kernel,
        out_shape=jax.ShapeDtypeStruct((1, 1), jnp.float32),
        grid_spec=pltpu.PrefetchScalarGridSpec(
            num_scalar_prefetch=0,
            grid=grid,
            in_specs=[
                pl.BlockSpec((block_rows, lane_dim), lambda i: (i, 0)),
                pl.BlockSpec((block_rows, lane_dim), lambda i: (i, 0)),
            ],
            out_specs=pl.BlockSpec(memory_space=pltpu.MemorySpace.SMEM),
            scratch_shapes=[pltpu.VMEM((block_rows, lane_dim), jnp.float32)],
        ),
        compiler_params=pltpu.CompilerParams(
            dimension_semantics=("arbitrary",)),
        cost_estimate=cost,
    )(xin, tin)

    w = weight(global_step) if callable(weight) else weight
    return jnp.float32(w) * out[0, 0]


def _reference_loss(inp, tgt, loss_type, normalize_target, weight, global_step=0):
    """Pure-JAX reference mirroring the PyTorch module."""
    x = inp.astype(jnp.float32)
    t = tgt.astype(jnp.float32)
    if normalize_target:
        mean = t.mean(axis=-1, keepdims=True)
        var = t.var(axis=-1, ddof=1, keepdims=True)
        t = (t - mean) / jnp.sqrt(var + 1e-6)
    if loss_type == "mse":
        loss = jnp.mean((x - t) ** 2)
    elif loss_type == "mse_sum":
        loss = jnp.sum((x - t) ** 2) / x.shape[0]
    elif loss_type == "l1":
        loss = jnp.mean(jnp.abs(x - t))
    elif loss_type == "cosine":
        eps = 1e-8
        num = jnp.sum(x * t, axis=-1)
        nx = jnp.sqrt(jnp.sum(x * x, axis=-1))
        nt = jnp.sqrt(jnp.sum(t * t, axis=-1))
        loss = -jnp.mean(num / (jnp.maximum(nx, eps) * jnp.maximum(nt, eps)))
    elif loss_type == "cross_entropy_sum":
        xf = x.reshape(-1, x.shape[-1])
        tf = t.reshape(-1, t.shape[-1])
        logp = jax.nn.log_softmax(xf, axis=-1)
        loss = -jnp.sum(tf * logp) / x.shape[0]
    else:
        raise ValueError(loss_type)
    w = weight(global_step) if callable(weight) else weight
    return jnp.float32(w) * loss


if __name__ == "__main__":
    key = jax.random.PRNGKey(0)
    k1, k2 = jax.random.split(key)
    B, S, D = 2, 8, 32
    inp = jax.random.normal(k1, (B, S, D), dtype=jnp.float32)
    tgt = jax.random.normal(k2, (B, S, D), dtype=jnp.float32)

    configs = [
        dict(loss_type="mse", normalize_target=True, weight=0.5),
        dict(loss_type="mse_sum", normalize_target=False, weight=1.0),
        dict(loss_type="l1", normalize_target=False, weight=2.0),
        dict(loss_type="cosine", normalize_target=True, weight=1.0),
        dict(loss_type="cross_entropy_sum", normalize_target=False, weight=1.0),
        dict(loss_type="mse", normalize_target=False, weight=1.0,
             dtype=jnp.bfloat16),      # native-dtype (bf16) streaming path
    ]

    ok = True
    for cfg in configs:
        cfg = dict(cfg)
        dtype = cfg.pop("dtype", jnp.float32)
        inp_use = inp.astype(dtype)
        tgt_use = tgt.astype(dtype)
        if cfg["loss_type"] == "cross_entropy_sum":
            # soft-label probability targets, like F.cross_entropy with prob targets
            tgt_use = jax.nn.softmax(tgt, axis=-1).astype(dtype)
        got = reconstruction_loss(inp_use, tgt_use, global_step=0, **cfg)
        got = jax.block_until_ready(got)
        want = _reference_loss(inp_use, tgt_use, cfg["loss_type"],
                               cfg["normalize_target"], cfg["weight"])
        if not jnp.allclose(got, want, rtol=1e-4, atol=1e-5):
            ok = False
            print(f"MISMATCH {cfg['loss_type']} ({jnp.dtype(dtype).name}): "
                  f"got {got}, want {want}")

    if ok:
        print("KERNEL_OK")
</pallas_src>

<mosaic_0001>
module attributes {stable_mosaic.version = 11 : i64} {
  func.func @kernel(%arg0: i32, %arg1: memref<16x32xf32, #tpu.memory_space<vmem>>, %arg2: memref<16x32xf32, #tpu.memory_space<vmem>>, %arg3: memref<1x1xf32, #tpu.memory_space<smem>>, %arg4: memref<16x32xf32, #tpu.memory_space<vmem>>) attributes {dimension_semantics = [#tpu.dimension_semantics<arbitrary>], iteration_bounds = array<i64: 1>, scalar_prefetch = 0 : i64, scratch_operands = 1 : i64, tpu.core_type = #tpu.core_type<tc>, window_params = [{transform_indices = @transform_0, window_bounds = array<i64: 16, 32>}, {transform_indices = @transform_1, window_bounds = array<i64: 16, 32>}, {transform_indices = @transform_2, window_bounds = array<i64: 1, 1>}]} {
    %c0_i32 = arith.constant 0 : i32
    %0 = arith.cmpi eq, %arg0, %c0_i32 : i32
    %1 = arith.extui %0 : i1 to i32
    %c0_i32_0 = arith.constant 0 : i32
    %2 = arith.cmpi ne, %1, %c0_i32_0 : i32
    scf.if %2 {
      %cst_14 = arith.constant 0.000000e+00 : f32
      %31 = vector.broadcast %cst_14 : f32 to vector<16x32xf32>
      %c0_15 = arith.constant 0 : index
      %c0_16 = arith.constant 0 : index
      %32 = vector.load %arg4[%c0_15, %c0_16] : memref<16x32xf32, #tpu.memory_space<vmem>>, vector<16x32xf32>
      tpu.vector_store %arg4[%c0_15, %c0_16], %31 {strides = array<i32>} : memref<16x32xf32, #tpu.memory_space<vmem>>, vector<16x32xf32>,
    } else {
    }
    %c0 = arith.constant 0 : index
    %c0_1 = arith.constant 0 : index
    %3 = vector.load %arg1[%c0, %c0_1] : memref<16x32xf32, #tpu.memory_space<vmem>>, vector<16x32xf32>
    %c0_2 = arith.constant 0 : index
    %c0_3 = arith.constant 0 : index
    %4 = vector.load %arg2[%c0_2, %c0_3] : memref<16x32xf32, #tpu.memory_space<vmem>>, vector<16x32xf32>
    %cst = arith.constant dense<0.000000e+00> : vector<16xf32>
    %5 = vector.multi_reduction <add>, %4, %cst [1] : vector<16x32xf32> to vector<16xf32>
    %6 = vector.shape_cast %5 : vector<16xf32> to vector<16x1xf32>
    %cst_4 = arith.constant 3.200000e+01 : f32
    %7 = vector.broadcast %cst_4 : f32 to vector<16x1xf32>
    %8 = arith.divf %6, %7 : vector<16x1xf32>
    %9 = vector.broadcast %8 : vector<16x1xf32> to vector<16x32xf32>
    %10 = arith.subf %4, %9 : vector<16x32xf32>
    %11 = arith.mulf %10, %10 : vector<16x32xf32>
    %cst_5 = arith.constant dense<0.000000e+00> : vector<16xf32>
    %12 = vector.multi_reduction <add>, %11, %cst_5 [1] : vector<16x32xf32> to vector<16xf32>
    %13 = vector.shape_cast %12 : vector<16xf32> to vector<16x1xf32>
    %cst_6 = arith.constant 0.0322580636 : f32
    %14 = vector.broadcast %cst_6 : f32 to vector<16x1xf32>
    %15 = arith.mulf %13, %14 : vector<16x1xf32>
    %16 = vector.broadcast %8 : vector<16x1xf32> to vector<16x32xf32>
    %17 = arith.subf %4, %16 : vector<16x32xf32>
    %cst_7 = arith.constant 9.99999997E-7 : f32
    %18 = vector.broadcast %cst_7 : f32 to vector<16x1xf32>
    %19 = arith.addf %15, %18 : vector<16x1xf32>
    %20 = math.rsqrt %19 : vector<16x1xf32>
    %21 = vector.broadcast %20 : vector<16x1xf32> to vector<16x32xf32>
    %22 = arith.mulf %17, %21 : vector<16x32xf32>
    %23 = arith.subf %3, %22 : vector<16x32xf32>
    %24 = arith.mulf %23, %23 : vector<16x32xf32>
    %c0_8 = arith.constant 0 : index
    %c0_9 = arith.constant 0 : index
    %25 = vector.load %arg4[%c0_8, %c0_9] : memref<16x32xf32, #tpu.memory_space<vmem>>, vector<16x32xf32>
    %26 = arith.addf %25, %24 : vector<16x32xf32>
    %c0_10 = arith.constant 0 : index
    %c0_11 = arith.constant 0 : index
    %27 = vector.load %arg4[%c0_10, %c0_11] : memref<16x32xf32, #tpu.memory_space<vmem>>, vector<16x32xf32>
    tpu.vector_store %arg4[%c0_10, %c0_11], %26 {strides = array<i32>} : memref<16x32xf32, #tpu.memory_space<vmem>>, vector<16x32xf32>,
    %c0_i32_12 = arith.constant 0 : i32
    %28 = arith.cmpi eq, %arg0, %c0_i32_12 : i32
    %29 = arith.extui %28 : i1 to i32
    %c0_i32_13 = arith.constant 0 : i32
    %30 = arith.cmpi ne, %29, %c0_i32_13 : i32
    scf.if %30 {
      %c0_14 = arith.constant 0 : index
      %c0_15 = arith.constant 0 : index
      %31 = vector.load %arg4[%c0_14, %c0_15] : memref<16x32xf32, #tpu.memory_space<vmem>>, vector<16x32xf32>
      %32 = vector.shape_cast %31 : vector<16x32xf32> to vector<1x16x32xf32>
      %cst_16 = arith.constant dense<0.000000e+00> : vector<1xf32>
      %33 = vector.multi_reduction <add>, %32, %cst_16 [1, 2] : vector<1x16x32xf32> to vector<1xf32>
      %34 = vector.shape_cast %33 : vector<1xf32> to vector<1x1x1xf32>
      %35 = vector.extract %34[0, 0, 0] : f32 from vector<1x1x1xf32>
      %cst_17 = arith.constant 0.001953125 : f32
      %36 = arith.mulf %35, %cst_17 : f32
      %c0_18 = arith.constant 0 : index
      %c0_19 = arith.constant 0 : index
      %37 = memref.load %arg3[%c0_18, %c0_19] : memref<1x1xf32, #tpu.memory_space<smem>>
      memref.store %36, %arg3[%c0_18, %c0_19] : memref<1x1xf32, #tpu.memory_space<smem>>
    } else {
    }
    return
  }
  func.func @transform_0(%arg0: i32) -> (i32, i32) {
    %c0_i32 = arith.constant 0 : i32
    %c0_i32_0 = arith.constant 0 : i32
    return %arg0, %c0_i32 : i32, i32
  }
  func.func @transform_1(%arg0: i32) -> (i32, i32) {
    %c0_i32 = arith.constant 0 : i32
    %c0_i32_0 = arith.constant 0 : i32
    return %arg0, %c0_i32 : i32, i32
  }
  func.func @transform_2(%arg0: i32) -> (i32, i32) {
    %c0_i32 = arith.constant 0 : i32
    %c0_i32_0 = arith.constant 0 : i32
    %c0_i32_1 = arith.constant 0 : i32
    return %c0_i32, %c0_i32_0 : i32, i32
  }
}

</mosaic_0001>

<llo_original>
// kernel: tpu_custom_call.1
$region0: #{tpu_custom_call.1}
  #allocation0 [shape = 'u32[]', space=smem, size = 0x4, offset = 0x4, fixed_abs, tag = 'smem constant byte address 0x4 - core index']
  #allocation1 [shape = 'u32[144,128]{1,0:T(1,128)}', space=vmem, size = 0x12000, scoped, tag = 'internal scratch']
  #allocation2 [shape = 'f32[16,32]{1,0:T(8,128)}', space=vmem, size = 0x2000, scoped, tag = 'scratch operand']
  %s0 = inlined_call_operand.hbm [shape: f32[16,32], index: 0, kind: input, shape index: {}]
  %s1 = inlined_call_operand.hbm [shape: f32[16,32], index: 1, kind: input, shape index: {}]
  %s2 = inlined_call_operand.hbm [shape: f32[1,1], index: 2, kind: output, shape index: {}]
  %s3 = sld [smem:[#allocation0]]
  $region34: #{tpu_custom_call.1} parent=0
    _
  %s5 = ssub.s32 1, %s3
  %s6 = scalar_select 0, %s5, %s3
  $region1: #{tpu_custom_call.1} parent=0
    #allocation3 [shape = 'u8[8192]{0}', space=vmem, size = 0x2000, scoped, tag = 'input window, operand 0, single buffered']
    #allocation4 [shape = 's32[1]{0}', space=sflag, size = 0x4, scoped, tag = 'scoped memory for tpu_custom_call.1']
    #allocation5 [shape = 's32[1]{0}', space=sflag, size = 0x4, scoped, tag = 'scoped memory for tpu_custom_call.1']
    #allocation6 [shape = 'u8[8192]{0}', space=vmem, size = 0x2000, scoped, tag = 'input window, operand 1, single buffered']
    #allocation7 [shape = 's32[1]{0}', space=sflag, size = 0x4, scoped, tag = 'scoped memory for tpu_custom_call.1']
    #allocation8 [shape = 'u8[512]{0}', space=smem, size = 0x200, scoped, tag = 'output window, operand 0, single buffered']
    %7 = vsyncpa [#allocation4], 0
    %8 = vsyncpa [#allocation7], 0
    %9 = vsyncpa [#allocation5], 0
    // Predicated region
    $region2: #{tpu_custom_call.1} parent=1 // pred_check
      _
    $region3: #{tpu_custom_call.1} parent=1 // pred_check_branch
      %11 = sbr.rel (0) target = $region5
    $region4: #{tpu_custom_call.1} parent=1 // pred_region
      %s13 = ssub.s32 256, 256
      %14 = vsyncadd [#allocation4], %s13
      %s15 = sshll.u32 [#allocation3], 4
      %s16 = int_to_ptr.vmem [resolvable:$true] %s15
      %21 = dma.hbm_to_vmem [thread:$0]  %s0, 256, %s16, [#allocation4], 128, 128, 8
    $region5: #{tpu_custom_call.1} parent=1 // pred_fallthru
      _
    // Predicated region
    $region6: #{tpu_custom_call.1} parent=1 // pred_check
      _
    $region7: #{tpu_custom_call.1} parent=1 // pred_check_branch
      %23 = sbr.rel (0) target = $region9
    $region8: #{tpu_custom_call.1} parent=1 // pred_region
      %s25 = ssub.s32 256, 256
      %26 = vsyncadd [#allocation7], %s25
      %s27 = sshll.u32 [#allocation6], 4
      %s28 = int_to_ptr.vmem [resolvable:$true] %s27
      %33 = dma.hbm_to_vmem [thread:$0]  %s1, 256, %s28, [#allocation7], 128, 128, 8
    $region9: #{tpu_custom_call.1} parent=1 // pred_fallthru
      _
    // Predicated region
    $region10: #{tpu_custom_call.1} parent=1 // pred_check
      _
    $region11: #{tpu_custom_call.1} parent=1 // pred_check_branch
      %35 = sbr.rel (0) target = $region13
    $region12: #{tpu_custom_call.1} parent=1 // pred_region
      %36 = dma.done [#allocation4], 256
    $region13: #{tpu_custom_call.1} parent=1 // pred_fallthru
      _
    // Predicated region
    $region14: #{tpu_custom_call.1} parent=1 // pred_check
      _
    $region15: #{tpu_custom_call.1} parent=1 // pred_check_branch
      %38 = sbr.rel (0) target = $region17
    $region16: #{tpu_custom_call.1} parent=1 // pred_region
      %39 = dma.done [#allocation7], 256
    $region17: #{tpu_custom_call.1} parent=1 // pred_fallthru
      _
    %p40 = scmp.eq.s32.totalorder 0, 0
    // Predicated region
    $region18: #{tpu_custom_call.1} parent=1 // pred_check
      %p41 = pneg %p40
    $region19: #{tpu_custom_call.1} parent=1 // pred_check_branch
      %43 = sbr.rel (%p41) target = $region21
    $region20: #{tpu_custom_call.1} parent=1 // pred_region
      %vm44 = vcmask 261120
      %45 = vst.msk [vmem:[#allocation2] sm:$0xff] %vm44, 0.0
      %46 = vst.msk [vmem:[#allocation2 + $0x8] sm:$0xff] %vm44, 0.0
    $region21: #{tpu_custom_call.1} parent=1 // pred_fallthru
      _
    %v47 = vld [vmem:[#allocation3] sm:$0xff]
    %v48 = vld [vmem:[#allocation3 + $0x8] sm:$0xff]
    %v49 = vld [vmem:[#allocation6] sm:$0xff]
    %v50 = vld [vmem:[#allocation6 + $0x8] sm:$0xff]
    %vm51 = vcmask 261120
    %v52 = vsel %vm51, %v49, 0.0
    %53 = vadd.xlane.f32.xlu0 %v52
    %v54 = vpop.xlane.xlu0 %53
    %v55 = vsel %vm51, %v50, 0.0
    %56 = vadd.xlane.f32.xlu0 %v55
    %v57 = vpop.xlane.xlu0 %56
    %v58 = vrcp.pop 32.0
    %v59 = vmul.f32 %v54, %v58
    %v60 = vmul.f32 %v57, %v58
    %v61 = vsub.f32 %v49, %v59
    %v62 = vsub.f32 %v50, %v60
    %v63 = vmul.f32 %v61, %v61
    %v64 = vmul.f32 %v62, %v62
    %v65 = vsel %vm51, %v63, 0.0
    %66 = vadd.xlane.f32.xlu0 %v65
    %v67 = vpop.xlane.xlu0 %66
    %v68 = vsel %vm51, %v64, 0.0
    %69 = vadd.xlane.f32.xlu0 %v68
    %v70 = vpop.xlane.xlu0 %69
    %v71 = vmul.f32 %v67, 0.032258064
    %v72 = vmul.f32 %v70, 0.032258064
    %v73 = vadd.f32 %v71, 1e-06
    %v74 = vadd.f32 %v72, 1e-06
    %v75 = vrsqrt.pop %v73
    %v76 = vrsqrt.pop %v74
    %v77 = vmul.f32 %v61, %v75
    %v78 = vmul.f32 %v62, %v76
    %v79 = vsub.f32 %v47, %v77
    %v80 = vsub.f32 %v48, %v78
    %v81 = vmul.f32 %v79, %v79
    %v82 = vmul.f32 %v80, %v80
    %v83 = vld [vmem:[#allocation2] sm:$0xff]
    %v84 = vld [vmem:[#allocation2 + $0x8] sm:$0xff]
    %v85 = vadd.f32 %v83, %v81
    %v86 = vadd.f32 %v84, %v82
    %87 = vst.msk [vmem:[#allocation2] sm:$0xff] %vm51, %v85
    %88 = vst.msk [vmem:[#allocation2 + $0x8] sm:$0xff] %vm51, %v86
    // Predicated region
    $region22: #{tpu_custom_call.1} parent=1 // pred_check
      %p89 = pneg %p40
    $region23: #{tpu_custom_call.1} parent=1 // pred_check_branch
      %91 = sbr.rel (%p89) target = $region25
    $region24: #{tpu_custom_call.1} parent=1 // pred_region
      %v92 = vld [vmem:[#allocation2] sm:$0xff]
      %v93 = vld [vmem:[#allocation2 + $0x8] sm:$0xff]
      %v94 = vsel %vm51, %v92, 0.0
      %v95 = vsel %vm51, %v93, 0.0
      %v96 = vadd.f32 %v94, %v95
      %97 = vadd.xlane.f32.xlu0 %v96
      %v98 = vpop.xlane.xlu0 %97
      %v99 = vrot.slane %v98, 4
      %v100 = vadd.f32 %v98, %v99
      %v101 = vrot.slane %v100, 2
      %v102 = vadd.f32 %v100, %v101
      %v103 = vrot.slane %v102, 1
      %v104 = vadd.f32 %v102, %v103
      %s105 = vtos %v104
      %s106 = smul.f32 %s105, 0.001953125
      %s107 = scalar_lea.smem [#allocation8], 0
      %108 = sst [smem:[%s107]] %s106
    $region25: #{tpu_custom_call.1} parent=1 // pred_fallthru
      _
    // Predicated region
    $region26: #{tpu_custom_call.1} parent=1 // pred_check
      _
    $region27: #{tpu_custom_call.1} parent=1 // pred_check_branch
      %110 = sbr.rel (0) target = $region29
    $region28: #{tpu_custom_call.1} parent=1 // pred_region
      %s112 = ssub.s32 16, 16
      %113 = vsyncadd [#allocation5], %s112
      %116 = dma.smem_to_hbm [#allocation8], 16, %s2, [#allocation5]
    $region29: #{tpu_custom_call.1} parent=1 // pred_fallthru
      _
    // Predicated region
    $region30: #{tpu_custom_call.1} parent=1 // pred_check
      _
    $region31: #{tpu_custom_call.1} parent=1 // pred_check_branch
      %118 = sbr.rel (0) target = $region33
    $region32: #{tpu_custom_call.1} parent=1 // pred_region
      %119 = dma.done [#allocation5], 16
    $region33: #{tpu_custom_call.1} parent=1 // pred_fallthru
      _
    %120 = sfence
    %121 = vsyncpa [#allocation4], 1
    %122 = vsyncpa [#allocation7], 1
    %123 = vsyncpa [#allocation5], 1

</llo_original>
